<compile_context>
chip_gen: v7x
topology: tpu7x:2x2x1
jax: 0.10.0
libtpu: 0.0.40
codegen_flags: <defaults>
</compile_context>

<pallas_src>
import functools

import jax
import jax.numpy as jnp
import numpy as np
from jax.experimental import pallas as pl
from jax.experimental.pallas import tpu as pltpu


def rnn_forecast_kernel(x_ref,        # (S*B, I)    time-major input, flattened
                        w_x_ref,      # (I, L*H)    x -> layer-0 block (zeros elsewhere)
                        w_h_ref,      # (L*H, L*H)  prev-hidden -> all-layers block matrix
                        b_step_ref,   # (1, L*H)    concatenated per-layer biases
                        ln_g_ref,     # (1, H)
                        ln_b_ref,     # (1, H)
                        head_w_ref,   # (H, F*O)    fused forecast heads
                        head_b_ref,   # (1, F*O)
                        out_ref,      # (B, F*O)
                        *, seq_len, batch):
    lh = w_h_ref.shape[0]              # num_layers * hidden
    hidden = ln_g_ref.shape[1]

    # Hoist weight/bias loads out of the unrolled loop (JAX does not CSE
    # loads/broadcasts across an unroll).
    w_h = w_h_ref[...]

    # x-side projections + bias do not depend on the recurrence -> compute
    # them for ALL time steps with a single MXU push, off the critical path,
    # then slice per step (static slices, hoisted before the serial loop).
    xz_all = (jnp.dot(x_ref[...], w_x_ref[...],
                      preferred_element_type=jnp.float32)
              + b_step_ref[...])                      # (S*B, L*H)
    xz = [xz_all[t * batch:(t + 1) * batch, :] for t in range(seq_len)]

    # ---- recurrence: one fused (B, L*H) x (L*H, L*H) MXU push + add + tanh
    #      per step on the serial critical path; state stays in vregs ----
    h_cat = jnp.zeros((batch, lh), dtype=jnp.float32)
    for t in range(seq_len):           # static unroll (seq is small)
        # TODO(synk): switch to lax.fori_loop(..., unroll=4-8) with h_cat as
        #             the carry if seq_len grows past ~32.
        h_cat = jnp.tanh(
            xz[t] + jnp.dot(h_cat, w_h, preferred_element_type=jnp.float32))
    # TODO(synk): training-mode nn.Dropout (stochastic mask) not implemented;
    #             inference-mode dropout is identity, which is what we compute.

    # ---- LayerNorm on the last layer's hidden state ----
    h_last = h_cat[:, lh - hidden:]                       # (B, H)
    mean = jnp.mean(h_last, axis=-1, keepdims=True)
    var = jnp.mean((h_last - mean) ** 2, axis=-1, keepdims=True)
    normed = (h_last - mean) * jax.lax.rsqrt(var + 1e-5)
    normed = normed * ln_g_ref[...] + ln_b_ref[...]

    # ---- fused forecast heads: one matmul, one contiguous store ----
    out_ref[...] = (jnp.dot(normed, head_w_ref[...],
                            preferred_element_type=jnp.float32)
                    + head_b_ref[...])


def rnn_forecasting(x, params, *, num_layers, forecast_steps):
    """x: (batch, seq, input_size) float32.
    Returns (batch, forecast_steps, output_size), or (batch, output_size) when
    forecast_steps == 1 (matching the PyTorch module)."""
    (w_xh, w_hh, b_h, w_layers, u_layers, b_layers,
     ln_g, ln_b, out_w, out_b) = params
    batch, seq, input_size = x.shape
    hidden = w_hh.shape[0]
    output_size = out_w.shape[-1]
    lh = num_layers * hidden

    # time-major, then flatten (seq, batch) so the kernel can project all
    # time steps with one matmul
    x_flat = jnp.transpose(x, (1, 0, 2)).reshape(seq * batch, input_size)

    # --- fused per-step weights (block matrices, zeros elsewhere) ---
    # layer 0:   tanh(x_t @ W_xh + h_old[0] @ W_hh + b_h)
    # layer l>0: tanh(h_old[l] @ U_{l-1} + h_old[l-1] @ W_{l-1} + b_{l-1})
    w_x = jnp.zeros((input_size, lh), jnp.float32)
    w_x = w_x.at[:, :hidden].set(w_xh)
    w_h = jnp.zeros((lh, lh), jnp.float32)
    w_h = w_h.at[:hidden, :hidden].set(w_hh)
    for l in range(1, num_layers):
        c0, c1 = l * hidden, (l + 1) * hidden
        w_h = w_h.at[(l - 1) * hidden:l * hidden, c0:c1].set(w_layers[l - 1])
        w_h = w_h.at[l * hidden:(l + 1) * hidden, c0:c1].set(u_layers[l - 1])
    b_step = jnp.concatenate([b_h, b_layers[:, 0, :]], axis=0).reshape(1, lh)

    # --- fused forecast heads: (H, F*O) weight + (1, F*O) bias ---
    head_w = jnp.transpose(out_w, (1, 0, 2)).reshape(
        hidden, forecast_steps * output_size)
    head_b = jnp.transpose(out_b, (1, 0, 2)).reshape(
        1, forecast_steps * output_size)

    vmem = pl.BlockSpec(memory_space=pltpu.MemorySpace.VMEM)
    kernel = functools.partial(rnn_forecast_kernel, seq_len=seq, batch=batch)
    out_flat = pl.pallas_call(
        kernel,
        out_shape=jax.ShapeDtypeStruct((batch, forecast_steps * output_size),
                                       jnp.float32),
        in_specs=[vmem] * 8,
        out_specs=vmem,
    )(x_flat, w_x, w_h, b_step, ln_g, ln_b, head_w, head_b)

    out = out_flat.reshape(batch, forecast_steps, output_size)
    if forecast_steps == 1:
        out = out[:, 0, :]
    return out


def rnn_forecasting_ref(x, params, *, num_layers, forecast_steps):
    """Pure-JAX reference following the PyTorch module literally (unfused)."""
    (w_xh, w_hh, b_h, w_layers, u_layers, b_layers,
     ln_g, ln_b, out_w, out_b) = params
    batch, seq, _ = x.shape
    hidden = w_hh.shape[0]
    X = jnp.transpose(x, (1, 0, 2))
    h = jnp.zeros((num_layers, batch, hidden), jnp.float32)
    for t in range(seq):
        x_t = X[t]
        new = [jnp.tanh(x_t @ w_xh + h[0] @ w_hh + b_h)]
        for l in range(1, num_layers):
            new.append(jnp.tanh(h[l] @ u_layers[l - 1]
                                + h[l - 1] @ w_layers[l - 1]
                                + b_layers[l - 1]))
        h = jnp.stack(new, axis=0)
    h_last = h[-1]
    mean = jnp.mean(h_last, axis=-1, keepdims=True)
    var = jnp.mean((h_last - mean) ** 2, axis=-1, keepdims=True)
    normed = (h_last - mean) * jax.lax.rsqrt(var + 1e-5) * ln_g + ln_b
    preds = [normed @ out_w[s] + out_b[s] for s in range(forecast_steps)]
    out = jnp.stack(preds, axis=1)
    if forecast_steps == 1:
        out = out[:, 0, :]
    return out


def make_params(key, input_size, hidden_size, num_layers, output_size,
                forecast_steps):
    assert num_layers >= 2, "demo builds the multi-layer parameter stacks"
    ks = jax.random.split(key, 8)
    w_xh = jax.random.normal(ks[0], (input_size, hidden_size), jnp.float32) * 0.1
    w_hh = jax.random.normal(ks[1], (hidden_size, hidden_size), jnp.float32) * 0.1
    b_h = jnp.zeros((1, hidden_size), jnp.float32)
    w_layers = jax.random.normal(
        ks[2], (num_layers - 1, hidden_size, hidden_size), jnp.float32) * 0.1
    u_layers = jax.random.normal(
        ks[3], (num_layers - 1, hidden_size, hidden_size), jnp.float32) * 0.1
    b_layers = jnp.zeros((num_layers - 1, 1, hidden_size), jnp.float32)
    ln_g = jnp.ones((1, hidden_size), jnp.float32)
    ln_b = jnp.zeros((1, hidden_size), jnp.float32)
    out_w = jax.random.normal(
        ks[4], (forecast_steps, hidden_size, output_size), jnp.float32) * 0.1
    out_b = jax.random.normal(
        ks[5], (forecast_steps, 1, output_size), jnp.float32) * 0.01
    return (w_xh, w_hh, b_h, w_layers, u_layers, b_layers,
            ln_g, ln_b, out_w, out_b)


if __name__ == "__main__":
    # small shapes consistent with the module's forward
    batch, seq, input_size = 2, 8, 8
    hidden_size, num_layers = 32, 2
    output_size, forecast_steps = 4, 3
    dropout = 0.2  # identity at inference

    key = jax.random.PRNGKey(0)
    kx, kp = jax.random.split(key)
    x = jax.random.normal(kx, (batch, seq, input_size), jnp.float32)
    params = make_params(kp, input_size, hidden_size, num_layers,
                         output_size, forecast_steps)

    out = rnn_forecasting(x, params, num_layers=num_layers,
                          forecast_steps=forecast_steps)
    out = jax.block_until_ready(out)
    assert out.shape == (batch, forecast_steps, output_size), out.shape

    # correctness check vs. the unfused pure-JAX reference (loose tolerance:
    # catches structural/fusion bugs, immune to MXU accumulation-order diffs)
    ref = jax.block_until_ready(
        rnn_forecasting_ref(x, params, num_layers=num_layers,
                            forecast_steps=forecast_steps))
    err = float(np.max(np.abs(np.asarray(out) - np.asarray(ref))))
    assert np.allclose(np.asarray(out), np.asarray(ref),
                       atol=2e-2, rtol=2e-2), err

    print("KERNEL_OK")
</pallas_src>

<mosaic_0001>
module attributes {stable_mosaic.version = 11 : i64} {
  func.func @rnn_forecast_kernel(%arg0: memref<16x8xf32, #tpu.memory_space<vmem>>, %arg1: memref<8x64xf32, #tpu.memory_space<vmem>>, %arg2: memref<64x64xf32, #tpu.memory_space<vmem>>, %arg3: memref<1x64xf32, #tpu.memory_space<vmem>>, %arg4: memref<1x32xf32, #tpu.memory_space<vmem>>, %arg5: memref<1x32xf32, #tpu.memory_space<vmem>>, %arg6: memref<32x12xf32, #tpu.memory_space<vmem>>, %arg7: memref<1x12xf32, #tpu.memory_space<vmem>>, %arg8: memref<2x12xf32, #tpu.memory_space<vmem>>) attributes {dimension_semantics = [], scalar_prefetch = 0 : i64, scratch_operands = 0 : i64, tpu.core_type = #tpu.core_type<tc>} {
    %c0 = arith.constant 0 : index
    %c0_0 = arith.constant 0 : index
    %0 = vector.load %arg2[%c0, %c0_0] : memref<64x64xf32, #tpu.memory_space<vmem>>, vector<64x64xf32>
    %c0_1 = arith.constant 0 : index
    %c0_2 = arith.constant 0 : index
    %1 = vector.load %arg0[%c0_1, %c0_2] : memref<16x8xf32, #tpu.memory_space<vmem>>, vector<16x8xf32>
    %c0_3 = arith.constant 0 : index
    %c0_4 = arith.constant 0 : index
    %2 = vector.load %arg1[%c0_3, %c0_4] : memref<8x64xf32, #tpu.memory_space<vmem>>, vector<8x64xf32>
    %cst = arith.constant dense<0.000000e+00> : vector<16x64xf32>
    %3 = tpu.matmul %1, %2, %cst {dimension_numbers = #tpu.dot_dimension_numbers<[1], [0], [0], [1], [0, 0, 1, 1], [], []>} : vector<16x8xf32>, vector<8x64xf32>, vector<16x64xf32> -> vector<16x64xf32>
    %c0_5 = arith.constant 0 : index
    %c0_6 = arith.constant 0 : index
    %4 = vector.load %arg3[%c0_5, %c0_6] : memref<1x64xf32, #tpu.memory_space<vmem>>, vector<1x64xf32>
    %5 = vector.broadcast %4 : vector<1x64xf32> to vector<16x64xf32>
    %6 = arith.addf %3, %5 : vector<16x64xf32>
    %7 = vector.extract_strided_slice %6 {offsets = [0, 0], sizes = [2, 64], strides = [1, 1]} : vector<16x64xf32> to vector<2x64xf32>
    %8 = vector.extract_strided_slice %6 {offsets = [2, 0], sizes = [2, 64], strides = [1, 1]} : vector<16x64xf32> to vector<2x64xf32>
    %9 = vector.extract_strided_slice %6 {offsets = [4, 0], sizes = [2, 64], strides = [1, 1]} : vector<16x64xf32> to vector<2x64xf32>
    %10 = vector.extract_strided_slice %6 {offsets = [6, 0], sizes = [2, 64], strides = [1, 1]} : vector<16x64xf32> to vector<2x64xf32>
    %11 = vector.extract_strided_slice %6 {offsets = [8, 0], sizes = [2, 64], strides = [1, 1]} : vector<16x64xf32> to vector<2x64xf32>
    %12 = vector.extract_strided_slice %6 {offsets = [10, 0], sizes = [2, 64], strides = [1, 1]} : vector<16x64xf32> to vector<2x64xf32>
    %13 = vector.extract_strided_slice %6 {offsets = [12, 0], sizes = [2, 64], strides = [1, 1]} : vector<16x64xf32> to vector<2x64xf32>
    %14 = vector.extract_strided_slice %6 {offsets = [14, 0], sizes = [2, 64], strides = [1, 1]} : vector<16x64xf32> to vector<2x64xf32>
    %cst_7 = arith.constant 0.000000e+00 : f32
    %15 = vector.broadcast %cst_7 : f32 to vector<2x64xf32>
    %cst_8 = arith.constant dense<0.000000e+00> : vector<2x64xf32>
    %16 = tpu.matmul %15, %0, %cst_8 {dimension_numbers = #tpu.dot_dimension_numbers<[1], [0], [0], [1], [0, 0, 1, 1], [], []>} : vector<2x64xf32>, vector<64x64xf32>, vector<2x64xf32> -> vector<2x64xf32>
    %17 = arith.addf %7, %16 : vector<2x64xf32>
    %18 = math.tanh %17 : vector<2x64xf32>
    %cst_9 = arith.constant dense<0.000000e+00> : vector<2x64xf32>
    %19 = tpu.matmul %18, %0, %cst_9 {dimension_numbers = #tpu.dot_dimension_numbers<[1], [0], [0], [1], [0, 0, 1, 1], [], []>} : vector<2x64xf32>, vector<64x64xf32>, vector<2x64xf32> -> vector<2x64xf32>
    %20 = arith.addf %8, %19 : vector<2x64xf32>
    %21 = math.tanh %20 : vector<2x64xf32>
    %cst_10 = arith.constant dense<0.000000e+00> : vector<2x64xf32>
    %22 = tpu.matmul %21, %0, %cst_10 {dimension_numbers = #tpu.dot_dimension_numbers<[1], [0], [0], [1], [0, 0, 1, 1], [], []>} : vector<2x64xf32>, vector<64x64xf32>, vector<2x64xf32> -> vector<2x64xf32>
    %23 = arith.addf %9, %22 : vector<2x64xf32>
    %24 = math.tanh %23 : vector<2x64xf32>
    %cst_11 = arith.constant dense<0.000000e+00> : vector<2x64xf32>
    %25 = tpu.matmul %24, %0, %cst_11 {dimension_numbers = #tpu.dot_dimension_numbers<[1], [0], [0], [1], [0, 0, 1, 1], [], []>} : vector<2x64xf32>, vector<64x64xf32>, vector<2x64xf32> -> vector<2x64xf32>
    %26 = arith.addf %10, %25 : vector<2x64xf32>
    %27 = math.tanh %26 : vector<2x64xf32>
    %cst_12 = arith.constant dense<0.000000e+00> : vector<2x64xf32>
    %28 = tpu.matmul %27, %0, %cst_12 {dimension_numbers = #tpu.dot_dimension_numbers<[1], [0], [0], [1], [0, 0, 1, 1], [], []>} : vector<2x64xf32>, vector<64x64xf32>, vector<2x64xf32> -> vector<2x64xf32>
    %29 = arith.addf %11, %28 : vector<2x64xf32>
    %30 = math.tanh %29 : vector<2x64xf32>
    %cst_13 = arith.constant dense<0.000000e+00> : vector<2x64xf32>
    %31 = tpu.matmul %30, %0, %cst_13 {dimension_numbers = #tpu.dot_dimension_numbers<[1], [0], [0], [1], [0, 0, 1, 1], [], []>} : vector<2x64xf32>, vector<64x64xf32>, vector<2x64xf32> -> vector<2x64xf32>
    %32 = arith.addf %12, %31 : vector<2x64xf32>
    %33 = math.tanh %32 : vector<2x64xf32>
    %cst_14 = arith.constant dense<0.000000e+00> : vector<2x64xf32>
    %34 = tpu.matmul %33, %0, %cst_14 {dimension_numbers = #tpu.dot_dimension_numbers<[1], [0], [0], [1], [0, 0, 1, 1], [], []>} : vector<2x64xf32>, vector<64x64xf32>, vector<2x64xf32> -> vector<2x64xf32>
    %35 = arith.addf %13, %34 : vector<2x64xf32>
    %36 = math.tanh %35 : vector<2x64xf32>
    %cst_15 = arith.constant dense<0.000000e+00> : vector<2x64xf32>
    %37 = tpu.matmul %36, %0, %cst_15 {dimension_numbers = #tpu.dot_dimension_numbers<[1], [0], [0], [1], [0, 0, 1, 1], [], []>} : vector<2x64xf32>, vector<64x64xf32>, vector<2x64xf32> -> vector<2x64xf32>
    %38 = arith.addf %14, %37 : vector<2x64xf32>
    %39 = math.tanh %38 : vector<2x64xf32>
    %40 = vector.extract_strided_slice %39 {offsets = [0, 32], sizes = [2, 32], strides = [1, 1]} : vector<2x64xf32> to vector<2x32xf32>
    %cst_16 = arith.constant dense<0.000000e+00> : vector<2xf32>
    %41 = vector.multi_reduction <add>, %40, %cst_16 [1] : vector<2x32xf32> to vector<2xf32>
    %42 = vector.shape_cast %41 : vector<2xf32> to vector<2x1xf32>
    %cst_17 = arith.constant 3.200000e+01 : f32
    %43 = vector.broadcast %cst_17 : f32 to vector<2x1xf32>
    %44 = arith.divf %42, %43 : vector<2x1xf32>
    %45 = vector.broadcast %44 : vector<2x1xf32> to vector<2x32xf32>
    %46 = arith.subf %40, %45 : vector<2x32xf32>
    %47 = arith.mulf %46, %46 : vector<2x32xf32>
    %cst_18 = arith.constant dense<0.000000e+00> : vector<2xf32>
    %48 = vector.multi_reduction <add>, %47, %cst_18 [1] : vector<2x32xf32> to vector<2xf32>
    %49 = vector.shape_cast %48 : vector<2xf32> to vector<2x1xf32>
    %cst_19 = arith.constant 3.200000e+01 : f32
    %50 = vector.broadcast %cst_19 : f32 to vector<2x1xf32>
    %51 = arith.divf %49, %50 : vector<2x1xf32>
    %52 = vector.broadcast %44 : vector<2x1xf32> to vector<2x32xf32>
    %53 = arith.subf %40, %52 : vector<2x32xf32>
    %cst_20 = arith.constant 9.99999974E-6 : f32
    %54 = vector.broadcast %cst_20 : f32 to vector<2x1xf32>
    %55 = arith.addf %51, %54 : vector<2x1xf32>
    %56 = math.rsqrt %55 : vector<2x1xf32>
    %57 = vector.broadcast %56 : vector<2x1xf32> to vector<2x32xf32>
    %58 = arith.mulf %53, %57 : vector<2x32xf32>
    %c0_21 = arith.constant 0 : index
    %c0_22 = arith.constant 0 : index
    %59 = vector.load %arg4[%c0_21, %c0_22] : memref<1x32xf32, #tpu.memory_space<vmem>>, vector<1x32xf32>
    %60 = vector.broadcast %59 : vector<1x32xf32> to vector<2x32xf32>
    %61 = arith.mulf %58, %60 : vector<2x32xf32>
    %c0_23 = arith.constant 0 : index
    %c0_24 = arith.constant 0 : index
    %62 = vector.load %arg5[%c0_23, %c0_24] : memref<1x32xf32, #tpu.memory_space<vmem>>, vector<1x32xf32>
    %63 = vector.broadcast %62 : vector<1x32xf32> to vector<2x32xf32>
    %64 = arith.addf %61, %63 : vector<2x32xf32>
    %c0_25 = arith.constant 0 : index
    %c0_26 = arith.constant 0 : index
    %65 = vector.load %arg6[%c0_25, %c0_26] : memref<32x12xf32, #tpu.memory_space<vmem>>, vector<32x12xf32>
    %cst_27 = arith.constant dense<0.000000e+00> : vector<2x12xf32>
    %66 = tpu.matmul %64, %65, %cst_27 {dimension_numbers = #tpu.dot_dimension_numbers<[1], [0], [0], [1], [0, 0, 1, 1], [], []>} : vector<2x32xf32>, vector<32x12xf32>, vector<2x12xf32> -> vector<2x12xf32>
    %c0_28 = arith.constant 0 : index
    %c0_29 = arith.constant 0 : index
    %67 = vector.load %arg7[%c0_28, %c0_29] : memref<1x12xf32, #tpu.memory_space<vmem>>, vector<1x12xf32>
    %68 = vector.broadcast %67 : vector<1x12xf32> to vector<2x12xf32>
    %69 = arith.addf %66, %68 : vector<2x12xf32>
    %c0_30 = arith.constant 0 : index
    %c0_31 = arith.constant 0 : index
    %70 = vector.load %arg8[%c0_30, %c0_31] : memref<2x12xf32, #tpu.memory_space<vmem>>, vector<2x12xf32>
    tpu.vector_store %arg8[%c0_30, %c0_31], %69 {strides = array<i32>} : memref<2x12xf32, #tpu.memory_space<vmem>>, vector<2x12xf32>,
    return
  }
}

</mosaic_0001>

<llo_original>
// kernel: tpu_custom_call.1
$region0: #{tpu_custom_call.1}
  #allocation0 [shape = 'u32[]', space=smem, size = 0x4, offset = 0x4, fixed_abs, tag = 'smem constant byte address 0x4 - core index']
  #allocation1 [shape = 'u32[144,128]{1,0:T(1,128)}', space=vmem, size = 0x12000, scoped, tag = 'internal scratch']
  %s0 = inlined_call_operand.vmem [shape: f32[16,8], index: 0, kind: input, shape index: {}]
  %s1 = inlined_call_operand.hbm [shape: f32[8,64], index: 1, kind: input, shape index: {}]
  %s2 = inlined_call_operand.vmem [shape: f32[64,64], index: 2, kind: input, shape index: {}]
  %s3 = inlined_call_operand.vmem [shape: f32[1,64], index: 3, kind: input, shape index: {}]
  %s4 = inlined_call_operand.vmem [shape: f32[1,32], index: 4, kind: input, shape index: {}]
  %s5 = inlined_call_operand.vmem [shape: f32[1,32], index: 5, kind: input, shape index: {}]
  %s6 = inlined_call_operand.vmem [shape: f32[32,12], index: 6, kind: input, shape index: {}]
  %s7 = inlined_call_operand.vmem [shape: f32[1,12], index: 7, kind: input, shape index: {}]
  %s8 = inlined_call_operand.hbm [shape: f32[2,12], index: 8, kind: output, shape index: {}]
  %s9 = sld [smem:[#allocation0]]
  $region46: #{tpu_custom_call.1} parent=0
    _
  %s11 = ssub.s32 1, %s9
  %s12 = scalar_select 0, %s11, %s9
  $region1: #{tpu_custom_call.1} parent=0
    #allocation2 [shape = 'u8[4096]{0}', space=vmem, size = 0x1000, scoped, tag = 'input window, operand 1, single buffered']
    #allocation3 [shape = 's32[1]{0}', space=sflag, size = 0x4, scoped, tag = 'scoped memory for tpu_custom_call.1']
    #allocation4 [shape = 's32[1]{0}', space=sflag, size = 0x4, scoped, tag = 'scoped memory for tpu_custom_call.1']
    #allocation5 [shape = 'u8[1024]{0}', space=vmem, size = 0x400, scoped, tag = 'output window, operand 0, single buffered']
    %13 = vsyncpa [#allocation3], 0
    %14 = vsyncpa [#allocation4], 0
    // Predicated region
    $region2: #{tpu_custom_call.1} parent=1 // pred_check
      _
    $region3: #{tpu_custom_call.1} parent=1 // pred_check_branch
      %16 = sbr.rel (0) target = $region5
    $region4: #{tpu_custom_call.1} parent=1 // pred_region
      _
    $region5: #{tpu_custom_call.1} parent=1 // pred_fallthru
      _
    // Predicated region
    $region6: #{tpu_custom_call.1} parent=1 // pred_check
      _
    $region7: #{tpu_custom_call.1} parent=1 // pred_check_branch
      %18 = sbr.rel (0) target = $region9
    $region8: #{tpu_custom_call.1} parent=1 // pred_region
      %s20 = ssub.s32 128, 128
      %21 = vsyncadd [#allocation3], %s20
      %s23 = sshll.u32 [#allocation2], 4
      %s24 = int_to_ptr.vmem [resolvable:$true] %s23
      %26 = dma.hbm_to_vmem [thread:$0]  %s1, 128, %s24, [#allocation3]
    $region9: #{tpu_custom_call.1} parent=1 // pred_fallthru
      _
    // Predicated region
    $region10: #{tpu_custom_call.1} parent=1 // pred_check
      _
    $region11: #{tpu_custom_call.1} parent=1 // pred_check_branch
      %28 = sbr.rel (0) target = $region13
    $region12: #{tpu_custom_call.1} parent=1 // pred_region
      _
    $region13: #{tpu_custom_call.1} parent=1 // pred_fallthru
      _
    // Predicated region
    $region14: #{tpu_custom_call.1} parent=1 // pred_check
      _
    $region15: #{tpu_custom_call.1} parent=1 // pred_check_branch
      %30 = sbr.rel (0) target = $region17
    $region16: #{tpu_custom_call.1} parent=1 // pred_region
      _
    $region17: #{tpu_custom_call.1} parent=1 // pred_fallthru
      _
    // Predicated region
    $region18: #{tpu_custom_call.1} parent=1 // pred_check
      _
    $region19: #{tpu_custom_call.1} parent=1 // pred_check_branch
      %32 = sbr.rel (0) target = $region21
    $region20: #{tpu_custom_call.1} parent=1 // pred_region
      _
    $region21: #{tpu_custom_call.1} parent=1 // pred_fallthru
      _
    // Predicated region
    $region22: #{tpu_custom_call.1} parent=1 // pred_check
      _
    $region23: #{tpu_custom_call.1} parent=1 // pred_check_branch
      %34 = sbr.rel (0) target = $region25
    $region24: #{tpu_custom_call.1} parent=1 // pred_region
      _
    $region25: #{tpu_custom_call.1} parent=1 // pred_fallthru
      _
    // Predicated region
    $region26: #{tpu_custom_call.1} parent=1 // pred_check
      _
    $region27: #{tpu_custom_call.1} parent=1 // pred_check_branch
      %36 = sbr.rel (0) target = $region29
    $region28: #{tpu_custom_call.1} parent=1 // pred_region
      _
    $region29: #{tpu_custom_call.1} parent=1 // pred_fallthru
      _
    // Predicated region
    $region30: #{tpu_custom_call.1} parent=1 // pred_check
      _
    $region31: #{tpu_custom_call.1} parent=1 // pred_check_branch
      %38 = sbr.rel (0) target = $region33
    $region32: #{tpu_custom_call.1} parent=1 // pred_region
      _
    $region33: #{tpu_custom_call.1} parent=1 // pred_fallthru
      _
    // Predicated region
    $region34: #{tpu_custom_call.1} parent=1 // pred_check
      _
    $region35: #{tpu_custom_call.1} parent=1 // pred_check_branch
      %40 = sbr.rel (0) target = $region37
    $region36: #{tpu_custom_call.1} parent=1 // pred_region
      %41 = dma.done [#allocation3], 128
    $region37: #{tpu_custom_call.1} parent=1 // pred_fallthru
      _
    %v42 = vld [vmem:[%s2] sm:$0xff]
    %v43 = vld [vmem:[%s2 + $0x8] sm:$0xff]
    %v44 = vld [vmem:[%s2 + $0x10] sm:$0xff]
    %v45 = vld [vmem:[%s2 + $0x18] sm:$0xff]
    %v46 = vld [vmem:[%s2 + $0x20] sm:$0xff]
    %v47 = vld [vmem:[%s2 + $0x28] sm:$0xff]
    %v48 = vld [vmem:[%s2 + $0x30] sm:$0xff]
    %v49 = vld [vmem:[%s2 + $0x38] sm:$0xff]
    %v50 = vld [vmem:[%s0] sm:$0xff]
    %v51 = vld [vmem:[%s0 + $0x8] sm:$0xff]
    %v52 = vld [vmem:[#allocation2] sm:$0xff]
    %v53 = vld [vmem:[%s3] sm:$0x1]
    %v55 = vlaneseq
    %v56 = vshrl.u32 %v55, 7
    %v57 = vsub.s32 0, %v56
    %v58 = vrot.slane %v53, %v57
    %vm60 = vcmask 64512
    %v62 = vsel %vm60, %v50, 0
    %v65 = vsel %vm60, %v51, 0
    %67 = vmatprep.subr.mxu0 0.0
    %68 = vmatpush1.msra.mxu0 %v52
    %69 = vmatprep.subr.mxu0 0.0
    %70 = vmatpush1.msra.mxu0 0.0
    %71 = vmatprep.subr.mxu0 0.0
    %72 = vmatpush1.msra.mxu0 0.0
    %73 = vmatprep.subr.mxu0 0.0
    %74 = vmatpush1.msra.mxu0 0.0
    %75 = vmatprep.subr.mxu0 0.0
    %76 = vmatpush1.msra.mxu0 0.0
    %77 = vmatprep.subr.mxu0 0.0
    %78 = vmatpush1.msra.mxu0 0.0
    %79 = vmatprep.subr.mxu0 0.0
    %80 = vmatpush1.msra.mxu0 0.0
    %81 = vmatprep.subr.mxu0 0.0
    %82 = vmatpush1.msra.mxu0 0.0
    %83 = vmatprep.subr.mxu0 0.0
    %84 = vmatpush1.msra.mxu0 0.0
    %85 = vmatprep.subr.mxu0 0.0
    %86 = vmatpush1.msra.mxu0 0.0
    %87 = vmatprep.subr.mxu0 0.0
    %88 = vmatpush1.msra.mxu0 0.0
    %89 = vmatprep.subr.mxu0 0.0
    %90 = vmatpush1.msra.mxu0 0.0
    %91 = vmatprep.subr.mxu0 0.0
    %92 = vmatpush1.msra.mxu0 0.0
    %93 = vmatprep.subr.mxu0 0.0
    %94 = vmatpush1.msra.mxu0 0.0
    %95 = vmatprep.subr.mxu0 0.0
    %96 = vmatpush1.msra.mxu0 0.0
    %97 = vmatprep.subr.mxu0 0.0
    %98 = vmatpush1.msra.mxu0 0.0
    %99 = vmatprep.subr.mxu0 0.0
    %100 = vmatpush1.msra.mxu0 0.0
    %101 = vmatprep.subr.mxu0 0.0
    %102 = vmatpush1.msra.mxu0 0.0
    %103 = vmatprep.subr.mxu0 0.0
    %104 = vmatpush1.msra.mxu0 0.0
    %105 = vmatprep.subr.mxu0 0.0
    %106 = vmatpush1.msra.mxu0 0.0
    %107 = vmatprep.subr.mxu0 0.0
    %108 = vmatpush1.msra.mxu0 0.0
    %109 = vmatprep.subr.mxu0 0.0
    %110 = vmatpush1.msra.mxu0 0.0
    %111 = vmatprep.subr.mxu0 0.0
    %112 = vmatpush1.msra.mxu0 0.0
    %113 = vmatprep.subr.mxu0 0.0
    %114 = vmatpush1.msra.mxu0 0.0
    %115 = vmatprep.subr.mxu0 0.0
    %116 = vmatpush1.msra.mxu0 0.0
    %117 = vmatprep.subr.mxu0 0.0
    %118 = vmatpush1.msra.mxu0 0.0
    %119 = vmatprep.subr.mxu0 0.0
    %120 = vmatpush1.msra.mxu0 0.0
    %121 = vmatprep.subr.mxu0 0.0
    %122 = vmatpush1.msra.mxu0 0.0
    %123 = vmatprep.subr.mxu0 0.0
    %124 = vmatpush1.msra.mxu0 0.0
    %125 = vmatprep.subr.mxu0 0.0
    %126 = vmatpush1.msra.mxu0 0.0
    %127 = vmatprep.subr.mxu0 0.0
    %128 = vmatpush1.msra.mxu0 0.0
    %129 = vmatprep.subr.mxu0 0.0
    %130 = vmatpush1.msra.mxu0 0.0
    %131 = vmatprep.mubr.f32.mxu0 0.0
    %132 = vmatmul.mubr.f32.gmra.mrb[0].mxu0 %v62
    %v133 = vpop.f32.mrb[0].mxu0
    %v134 = vadd.f32 %v58, %v133
    %v135 = vpop.f32.mrb[0].mxu0
    %136 = vmatprep.mubr.f32.mxu0 0.0
    %137 = vmatmul.mubr.f32.gmra.mrb[0].mxu0 %v65
    %v138 = vpop.f32.mrb[0].mxu0
    %v139 = vadd.f32 %v58, %v138
    %v140 = vpop.f32.mrb[0].mxu0
    %141 = vdwg.mxu0
    %vm142 = vcmask 523264
    %v144 = vsel %vm142, 0.0, 0
    %146 = vmatprep.subr.mxu0 0.0
    %147 = vmatpush1.msra.mxu0 %v42
    %148 = vmatprep.subr.mxu0 0.0
    %149 = vmatpush1.msra.mxu0 %v43
    %150 = vmatprep.subr.mxu0 0.0
    %151 = vmatpush1.msra.mxu0 %v44
    %152 = vmatprep.subr.mxu0 0.0
    %153 = vmatpush1.msra.mxu0 %v45
    %154 = vmatprep.subr.mxu0 0.0
    %155 = vmatpush1.msra.mxu0 %v46
    %156 = vmatprep.subr.mxu0 0.0
    %157 = vmatpush1.msra.mxu0 %v47
    %158 = vmatprep.subr.mxu0 0.0
    %159 = vmatpush1.msra.mxu0 %v48
    %160 = vmatprep.subr.mxu0 0.0
    %161 = vmatpush1.msra.mxu0 %v49
    %162 = vmatprep.subr.mxu0 0.0
    %163 = vmatpush1.msra.mxu0 0.0
    %164 = vmatprep.subr.mxu0 0.0
    %165 = vmatpush1.msra.mxu0 0.0
    %166 = vmatprep.subr.mxu0 0.0
    %167 = vmatpush1.msra.mxu0 0.0
    %168 = vmatprep.subr.mxu0 0.0
    %169 = vmatpush1.msra.mxu0 0.0
    %170 = vmatprep.subr.mxu0 0.0
    %171 = vmatpush1.msra.mxu0 0.0
    %172 = vmatprep.subr.mxu0 0.0
    %173 = vmatpush1.msra.mxu0 0.0
    %174 = vmatprep.subr.mxu0 0.0
    %175 = vmatpush1.msra.mxu0 0.0
    %176 = vmatprep.subr.mxu0 0.0
    %177 = vmatpush1.msra.mxu0 0.0
    %178 = vmatprep.subr.mxu0 0.0
    %179 = vmatpush1.msra.mxu0 0.0
    %180 = vmatprep.subr.mxu0 0.0
    %181 = vmatpush1.msra.mxu0 0.0
    %182 = vmatprep.subr.mxu0 0.0
    %183 = vmatpush1.msra.mxu0 0.0
    %184 = vmatprep.subr.mxu0 0.0
    %185 = vmatpush1.msra.mxu0 0.0
    %186 = vmatprep.subr.mxu0 0.0
    %187 = vmatpush1.msra.mxu0 0.0
    %188 = vmatprep.subr.mxu0 0.0
    %189 = vmatpush1.msra.mxu0 0.0
    %190 = vmatprep.subr.mxu0 0.0
    %191 = vmatpush1.msra.mxu0 0.0
    %192 = vmatprep.subr.mxu0 0.0
    %193 = vmatpush1.msra.mxu0 0.0
    %194 = vmatprep.subr.mxu0 0.0
    %195 = vmatpush1.msra.mxu0 0.0
    %196 = vmatprep.subr.mxu0 0.0
    %197 = vmatpush1.msra.mxu0 0.0
    %198 = vmatprep.subr.mxu0 0.0
    %199 = vmatpush1.msra.mxu0 0.0
    %200 = vmatprep.subr.mxu0 0.0
    %201 = vmatpush1.msra.mxu0 0.0
    %202 = vmatprep.subr.mxu0 0.0
    %203 = vmatpush1.msra.mxu0 0.0
    %204 = vmatprep.subr.mxu0 0.0
    %205 = vmatpush1.msra.mxu0 0.0
    %206 = vmatprep.subr.mxu0 0.0
    %207 = vmatpush1.msra.mxu0 0.0
    %208 = vmatprep.subr.mxu0 0.0
    %209 = vmatpush1.msra.mxu0 0.0
    %210 = vmatprep.mubr.f32.mxu0 0.0
    %211 = vmatmul.mubr.f32.gmra.mrb[0].mxu0 %v144
    %v212 = vpop.f32.mrb[0].mxu0
    %v213 = vadd.f32 0.0, %v212
    %v214 = vpop.f32.mrb[0].mxu0
    %215 = vdwg.mxu0
    %v216 = vadd.f32 %v134, %v213
    %v217 = vtanh.pop %v216
    %v219 = vsel %vm142, %v217, 0
    %221 = vmatprep.subr.mxu0 0.0
    %222 = vmatpush1.msra.mxu0 %v42
    %223 = vmatprep.subr.mxu0 0.0
    %224 = vmatpush1.msra.mxu0 %v43
    %225 = vmatprep.subr.mxu0 0.0
    %226 = vmatpush1.msra.mxu0 %v44
    %227 = vmatprep.subr.mxu0 0.0
    %228 = vmatpush1.msra.mxu0 %v45
    %229 = vmatprep.subr.mxu0 0.0
    %230 = vmatpush1.msra.mxu0 %v46
    %231 = vmatprep.subr.mxu0 0.0
    %232 = vmatpush1.msra.mxu0 %v47
    %233 = vmatprep.subr.mxu0 0.0
    %234 = vmatpush1.msra.mxu0 %v48
    %235 = vmatprep.subr.mxu0 0.0
    %236 = vmatpush1.msra.mxu0 %v49
    %237 = vmatprep.subr.mxu0 0.0
    %238 = vmatpush1.msra.mxu0 0.0
    %239 = vmatprep.subr.mxu0 0.0
    %240 = vmatpush1.msra.mxu0 0.0
    %241 = vmatprep.subr.mxu0 0.0
    %242 = vmatpush1.msra.mxu0 0.0
    %243 = vmatprep.subr.mxu0 0.0
    %244 = vmatpush1.msra.mxu0 0.0
    %245 = vmatprep.subr.mxu0 0.0
    %246 = vmatpush1.msra.mxu0 0.0
    %247 = vmatprep.subr.mxu0 0.0
    %248 = vmatpush1.msra.mxu0 0.0
    %249 = vmatprep.subr.mxu0 0.0
    %250 = vmatpush1.msra.mxu0 0.0
    %251 = vmatprep.subr.mxu0 0.0
    %252 = vmatpush1.msra.mxu0 0.0
    %253 = vmatprep.subr.mxu0 0.0
    %254 = vmatpush1.msra.mxu0 0.0
    %255 = vmatprep.subr.mxu0 0.0
    %256 = vmatpush1.msra.mxu0 0.0
    %257 = vmatprep.subr.mxu0 0.0
    %258 = vmatpush1.msra.mxu0 0.0
    %259 = vmatprep.subr.mxu0 0.0
    %260 = vmatpush1.msra.mxu0 0.0
    %261 = vmatprep.subr.mxu0 0.0
    %262 = vmatpush1.msra.mxu0 0.0
    %263 = vmatprep.subr.mxu0 0.0
    %264 = vmatpush1.msra.mxu0 0.0
    %265 = vmatprep.subr.mxu0 0.0
    %266 = vmatpush1.msra.mxu0 0.0
    %267 = vmatprep.subr.mxu0 0.0
    %268 = vmatpush1.msra.mxu0 0.0
    %269 = vmatprep.subr.mxu0 0.0
    %270 = vmatpush1.msra.mxu0 0.0
    %271 = vmatprep.subr.mxu0 0.0
    %272 = vmatpush1.msra.mxu0 0.0
    %273 = vmatprep.subr.mxu0 0.0
    %274 = vmatpush1.msra.mxu0 0.0
    %275 = vmatprep.subr.mxu0 0.0
    %276 = vmatpush1.msra.mxu0 0.0
    %277 = vmatprep.subr.mxu0 0.0
    %278 = vmatpush1.msra.mxu0 0.0
    %279 = vmatprep.subr.mxu0 0.0
    %280 = vmatpush1.msra.mxu0 0.0
    %281 = vmatprep.subr.mxu0 0.0
    %282 = vmatpush1.msra.mxu0 0.0
    %283 = vmatprep.subr.mxu0 0.0
    %284 = vmatpush1.msra.mxu0 0.0
    %285 = vmatprep.mubr.f32.mxu0 0.0
    %286 = vmatmul.mubr.f32.gmra.mrb[0].mxu0 %v219
    %v287 = vpop.f32.mrb[0].mxu0
    %v288 = vadd.f32 0.0, %v287
    %v289 = vpop.f32.mrb[0].mxu0
    %290 = vdwg.mxu0
    %v292 = vrot.slane %v288, 6
    %v294 = vadd.f32 %v134, %v292
    %v295 = vtanh.pop %v294
    %v297 = vrot.slane %v295, 2
    %v298 = vsel %vm142, %v297, 0
    %300 = vmatprep.subr.mxu0 0.0
    %301 = vmatpush1.msra.mxu0 %v42
    %302 = vmatprep.subr.mxu0 0.0
    %303 = vmatpush1.msra.mxu0 %v43
    %304 = vmatprep.subr.mxu0 0.0
    %305 = vmatpush1.msra.mxu0 %v44
    %306 = vmatprep.subr.mxu0 0.0
    %307 = vmatpush1.msra.mxu0 %v45
    %308 = vmatprep.subr.mxu0 0.0
    %309 = vmatpush1.msra.mxu0 %v46
    %310 = vmatprep.subr.mxu0 0.0
    %311 = vmatpush1.msra.mxu0 %v47
    %312 = vmatprep.subr.mxu0 0.0
    %313 = vmatpush1.msra.mxu0 %v48
    %314 = vmatprep.subr.mxu0 0.0
    %315 = vmatpush1.msra.mxu0 %v49
    %316 = vmatprep.subr.mxu0 0.0
    %317 = vmatpush1.msra.mxu0 0.0
    %318 = vmatprep.subr.mxu0 0.0
    %319 = vmatpush1.msra.mxu0 0.0
    %320 = vmatprep.subr.mxu0 0.0
    %321 = vmatpush1.msra.mxu0 0.0
    %322 = vmatprep.subr.mxu0 0.0
    %323 = vmatpush1.msra.mxu0 0.0
    %324 = vmatprep.subr.mxu0 0.0
    %325 = vmatpush1.msra.mxu0 0.0
    %326 = vmatprep.subr.mxu0 0.0
    %327 = vmatpush1.msra.mxu0 0.0
    %328 = vmatprep.subr.mxu0 0.0
    %329 = vmatpush1.msra.mxu0 0.0
    %330 = vmatprep.subr.mxu0 0.0
    %331 = vmatpush1.msra.mxu0 0.0
    %332 = vmatprep.subr.mxu0 0.0
    %333 = vmatpush1.msra.mxu0 0.0
    %334 = vmatprep.subr.mxu0 0.0
    %335 = vmatpush1.msra.mxu0 0.0
    %336 = vmatprep.subr.mxu0 0.0
    %337 = vmatpush1.msra.mxu0 0.0
    %338 = vmatprep.subr.mxu0 0.0
    %339 = vmatpush1.msra.mxu0 0.0
    %340 = vmatprep.subr.mxu0 0.0
    %341 = vmatpush1.msra.mxu0 0.0
    %342 = vmatprep.subr.mxu0 0.0
    %343 = vmatpush1.msra.mxu0 0.0
    %344 = vmatprep.subr.mxu0 0.0
    %345 = vmatpush1.msra.mxu0 0.0
    %346 = vmatprep.subr.mxu0 0.0
    %347 = vmatpush1.msra.mxu0 0.0
    %348 = vmatprep.subr.mxu0 0.0
    %349 = vmatpush1.msra.mxu0 0.0
    %350 = vmatprep.subr.mxu0 0.0
    %351 = vmatpush1.msra.mxu0 0.0
    %352 = vmatprep.subr.mxu0 0.0
    %353 = vmatpush1.msra.mxu0 0.0
    %354 = vmatprep.subr.mxu0 0.0
    %355 = vmatpush1.msra.mxu0 0.0
    %356 = vmatprep.subr.mxu0 0.0
    %357 = vmatpush1.msra.mxu0 0.0
    %358 = vmatprep.subr.mxu0 0.0
    %359 = vmatpush1.msra.mxu0 0.0
    %360 = vmatprep.subr.mxu0 0.0
    %361 = vmatpush1.msra.mxu0 0.0
    %362 = vmatprep.subr.mxu0 0.0
    %363 = vmatpush1.msra.mxu0 0.0
    %364 = vmatprep.mubr.f32.mxu0 0.0
    %365 = vmatmul.mubr.f32.gmra.mrb[0].mxu0 %v298
    %v366 = vpop.f32.mrb[0].mxu0
    %v367 = vadd.f32 0.0, %v366
    %v368 = vpop.f32.mrb[0].mxu0
    %369 = vdwg.mxu0
    %v371 = vrot.slane %v367, 4
    %v373 = vadd.f32 %v134, %v371
    %v374 = vtanh.pop %v373
    %v376 = vrot.slane %v374, 4
    %v377 = vsel %vm142, %v376, 0
    %379 = vmatprep.subr.mxu0 0.0
    %380 = vmatpush1.msra.mxu0 %v42
    %381 = vmatprep.subr.mxu0 0.0
    %382 = vmatpush1.msra.mxu0 %v43
    %383 = vmatprep.subr.mxu0 0.0
    %384 = vmatpush1.msra.mxu0 %v44
    %385 = vmatprep.subr.mxu0 0.0
    %386 = vmatpush1.msra.mxu0 %v45
    %387 = vmatprep.subr.mxu0 0.0
    %388 = vmatpush1.msra.mxu0 %v46
    %389 = vmatprep.subr.mxu0 0.0
    %390 = vmatpush1.msra.mxu0 %v47
    %391 = vmatprep.subr.mxu0 0.0
    %392 = vmatpush1.msra.mxu0 %v48
    %393 = vmatprep.subr.mxu0 0.0
    %394 = vmatpush1.msra.mxu0 %v49
    %395 = vmatprep.subr.mxu0 0.0
    %396 = vmatpush1.msra.mxu0 0.0
    %397 = vmatprep.subr.mxu0 0.0
    %398 = vmatpush1.msra.mxu0 0.0
    %399 = vmatprep.subr.mxu0 0.0
    %400 = vmatpush1.msra.mxu0 0.0
    %401 = vmatprep.subr.mxu0 0.0
    %402 = vmatpush1.msra.mxu0 0.0
    %403 = vmatprep.subr.mxu0 0.0
    %404 = vmatpush1.msra.mxu0 0.0
    %405 = vmatprep.subr.mxu0 0.0
    %406 = vmatpush1.msra.mxu0 0.0
    %407 = vmatprep.subr.mxu0 0.0
    %408 = vmatpush1.msra.mxu0 0.0
    %409 = vmatprep.subr.mxu0 0.0
    %410 = vmatpush1.msra.mxu0 0.0
    %411 = vmatprep.subr.mxu0 0.0
    %412 = vmatpush1.msra.mxu0 0.0
    %413 = vmatprep.subr.mxu0 0.0
    %414 = vmatpush1.msra.mxu0 0.0
    %415 = vmatprep.subr.mxu0 0.0
    %416 = vmatpush1.msra.mxu0 0.0
    %417 = vmatprep.subr.mxu0 0.0
    %418 = vmatpush1.msra.mxu0 0.0
    %419 = vmatprep.subr.mxu0 0.0
    %420 = vmatpush1.msra.mxu0 0.0
    %421 = vmatprep.subr.mxu0 0.0
    %422 = vmatpush1.msra.mxu0 0.0
    %423 = vmatprep.subr.mxu0 0.0
    %424 = vmatpush1.msra.mxu0 0.0
    %425 = vmatprep.subr.mxu0 0.0
    %426 = vmatpush1.msra.mxu0 0.0
    %427 = vmatprep.subr.mxu0 0.0
    %428 = vmatpush1.msra.mxu0 0.0
    %429 = vmatprep.subr.mxu0 0.0
    %430 = vmatpush1.msra.mxu0 0.0
    %431 = vmatprep.subr.mxu0 0.0
    %432 = vmatpush1.msra.mxu0 0.0
    %433 = vmatprep.subr.mxu0 0.0
    %434 = vmatpush1.msra.mxu0 0.0
    %435 = vmatprep.subr.mxu0 0.0
    %436 = vmatpush1.msra.mxu0 0.0
    %437 = vmatprep.subr.mxu0 0.0
    %438 = vmatpush1.msra.mxu0 0.0
    %439 = vmatprep.subr.mxu0 0.0
    %440 = vmatpush1.msra.mxu0 0.0
    %441 = vmatprep.subr.mxu0 0.0
    %442 = vmatpush1.msra.mxu0 0.0
    %443 = vmatprep.mubr.f32.mxu0 0.0
    %444 = vmatmul.mubr.f32.gmra.mrb[0].mxu0 %v377
    %v445 = vpop.f32.mrb[0].mxu0
    %v446 = vadd.f32 0.0, %v445
    %v447 = vpop.f32.mrb[0].mxu0
    %448 = vdwg.mxu0
    %v450 = vrot.slane %v446, 2
    %v452 = vadd.f32 %v134, %v450
    %v453 = vtanh.pop %v452
    %v455 = vrot.slane %v453, 6
    %v456 = vsel %vm142, %v455, 0
    %458 = vmatprep.subr.mxu0 0.0
    %459 = vmatpush1.msra.mxu0 %v42
    %460 = vmatprep.subr.mxu0 0.0
    %461 = vmatpush1.msra.mxu0 %v43
    %462 = vmatprep.subr.mxu0 0.0
    %463 = vmatpush1.msra.mxu0 %v44
    %464 = vmatprep.subr.mxu0 0.0
    %465 = vmatpush1.msra.mxu0 %v45
    %466 = vmatprep.subr.mxu0 0.0
    %467 = vmatpush1.msra.mxu0 %v46
    %468 = vmatprep.subr.mxu0 0.0
    %469 = vmatpush1.msra.mxu0 %v47
    %470 = vmatprep.subr.mxu0 0.0
    %471 = vmatpush1.msra.mxu0 %v48
    %472 = vmatprep.subr.mxu0 0.0
    %473 = vmatpush1.msra.mxu0 %v49
    %474 = vmatprep.subr.mxu0 0.0
    %475 = vmatpush1.msra.mxu0 0.0
    %476 = vmatprep.subr.mxu0 0.0
    %477 = vmatpush1.msra.mxu0 0.0
    %478 = vmatprep.subr.mxu0 0.0
    %479 = vmatpush1.msra.mxu0 0.0
    %480 = vmatprep.subr.mxu0 0.0
    %481 = vmatpush1.msra.mxu0 0.0
    %482 = vmatprep.subr.mxu0 0.0
    %483 = vmatpush1.msra.mxu0 0.0
    %484 = vmatprep.subr.mxu0 0.0
    %485 = vmatpush1.msra.mxu0 0.0
    %486 = vmatprep.subr.mxu0 0.0
    %487 = vmatpush1.msra.mxu0 0.0
    %488 = vmatprep.subr.mxu0 0.0
    %489 = vmatpush1.msra.mxu0 0.0
    %490 = vmatprep.subr.mxu0 0.0
    %491 = vmatpush1.msra.mxu0 0.0
    %492 = vmatprep.subr.mxu0 0.0
    %493 = vmatpush1.msra.mxu0 0.0
    %494 = vmatprep.subr.mxu0 0.0
    %495 = vmatpush1.msra.mxu0 0.0
    %496 = vmatprep.subr.mxu0 0.0
    %497 = vmatpush1.msra.mxu0 0.0
    %498 = vmatprep.subr.mxu0 0.0
    %499 = vmatpush1.msra.mxu0 0.0
    %500 = vmatprep.subr.mxu0 0.0
    %501 = vmatpush1.msra.mxu0 0.0
    %502 = vmatprep.subr.mxu0 0.0
    %503 = vmatpush1.msra.mxu0 0.0
    %504 = vmatprep.subr.mxu0 0.0
    %505 = vmatpush1.msra.mxu0 0.0
    %506 = vmatprep.subr.mxu0 0.0
    %507 = vmatpush1.msra.mxu0 0.0
    %508 = vmatprep.subr.mxu0 0.0
    %509 = vmatpush1.msra.mxu0 0.0
    %510 = vmatprep.subr.mxu0 0.0
    %511 = vmatpush1.msra.mxu0 0.0
    %512 = vmatprep.subr.mxu0 0.0
    %513 = vmatpush1.msra.mxu0 0.0
    %514 = vmatprep.subr.mxu0 0.0
    %515 = vmatpush1.msra.mxu0 0.0
    %516 = vmatprep.subr.mxu0 0.0
    %517 = vmatpush1.msra.mxu0 0.0
    %518 = vmatprep.subr.mxu0 0.0
    %519 = vmatpush1.msra.mxu0 0.0
    %520 = vmatprep.subr.mxu0 0.0
    %521 = vmatpush1.msra.mxu0 0.0
    %522 = vmatprep.mubr.f32.mxu0 0.0
    %523 = vmatmul.mubr.f32.gmra.mrb[0].mxu0 %v456
    %v524 = vpop.f32.mrb[0].mxu0
    %v525 = vadd.f32 0.0, %v524
    %v526 = vpop.f32.mrb[0].mxu0
    %527 = vdwg.mxu0
    %v528 = vadd.f32 %v139, %v525
    %v529 = vtanh.pop %v528
    %v531 = vsel %vm142, %v529, 0
    %533 = vmatprep.subr.mxu0 0.0
    %534 = vmatpush1.msra.mxu0 %v42
    %535 = vmatprep.subr.mxu0 0.0
    %536 = vmatpush1.msra.mxu0 %v43
    %537 = vmatprep.subr.mxu0 0.0
    %538 = vmatpush1.msra.mxu0 %v44
    %539 = vmatprep.subr.mxu0 0.0
    %540 = vmatpush1.msra.mxu0 %v45
    %541 = vmatprep.subr.mxu0 0.0
    %542 = vmatpush1.msra.mxu0 %v46
    %543 = vmatprep.subr.mxu0 0.0
    %544 = vmatpush1.msra.mxu0 %v47
    %545 = vmatprep.subr.mxu0 0.0
    %546 = vmatpush1.msra.mxu0 %v48
    %547 = vmatprep.subr.mxu0 0.0
    %548 = vmatpush1.msra.mxu0 %v49
    %549 = vmatprep.subr.mxu0 0.0
    %550 = vmatpush1.msra.mxu0 0.0
    %551 = vmatprep.subr.mxu0 0.0
    %552 = vmatpush1.msra.mxu0 0.0
    %553 = vmatprep.subr.mxu0 0.0
    %554 = vmatpush1.msra.mxu0 0.0
    %555 = vmatprep.subr.mxu0 0.0
    %556 = vmatpush1.msra.mxu0 0.0
    %557 = vmatprep.subr.mxu0 0.0
    %558 = vmatpush1.msra.mxu0 0.0
    %559 = vmatprep.subr.mxu0 0.0
    %560 = vmatpush1.msra.mxu0 0.0
    %561 = vmatprep.subr.mxu0 0.0
    %562 = vmatpush1.msra.mxu0 0.0
    %563 = vmatprep.subr.mxu0 0.0
    %564 = vmatpush1.msra.mxu0 0.0
    %565 = vmatprep.subr.mxu0 0.0
    %566 = vmatpush1.msra.mxu0 0.0
    %567 = vmatprep.subr.mxu0 0.0
    %568 = vmatpush1.msra.mxu0 0.0
    %569 = vmatprep.subr.mxu0 0.0
    %570 = vmatpush1.msra.mxu0 0.0
    %571 = vmatprep.subr.mxu0 0.0
    %572 = vmatpush1.msra.mxu0 0.0
    %573 = vmatprep.subr.mxu0 0.0
    %574 = vmatpush1.msra.mxu0 0.0
    %575 = vmatprep.subr.mxu0 0.0
    %576 = vmatpush1.msra.mxu0 0.0
    %577 = vmatprep.subr.mxu0 0.0
    %578 = vmatpush1.msra.mxu0 0.0
    %579 = vmatprep.subr.mxu0 0.0
    %580 = vmatpush1.msra.mxu0 0.0
    %581 = vmatprep.subr.mxu0 0.0
    %582 = vmatpush1.msra.mxu0 0.0
    %583 = vmatprep.subr.mxu0 0.0
    %584 = vmatpush1.msra.mxu0 0.0
    %585 = vmatprep.subr.mxu0 0.0
    %586 = vmatpush1.msra.mxu0 0.0
    %587 = vmatprep.subr.mxu0 0.0
    %588 = vmatpush1.msra.mxu0 0.0
    %589 = vmatprep.subr.mxu0 0.0
    %590 = vmatpush1.msra.mxu0 0.0
    %591 = vmatprep.subr.mxu0 0.0
    %592 = vmatpush1.msra.mxu0 0.0
    %593 = vmatprep.subr.mxu0 0.0
    %594 = vmatpush1.msra.mxu0 0.0
    %595 = vmatprep.subr.mxu0 0.0
    %596 = vmatpush1.msra.mxu0 0.0
    %597 = vmatprep.mubr.f32.mxu0 0.0
    %598 = vmatmul.mubr.f32.gmra.mrb[0].mxu0 %v531
    %v599 = vpop.f32.mrb[0].mxu0
    %v600 = vadd.f32 0.0, %v599
    %v601 = vpop.f32.mrb[0].mxu0
    %602 = vdwg.mxu0
    %v604 = vrot.slane %v600, 6
    %v606 = vadd.f32 %v139, %v604
    %v607 = vtanh.pop %v606
    %v609 = vrot.slane %v607, 2
    %v610 = vsel %vm142, %v609, 0
    %612 = vmatprep.subr.mxu0 0.0
    %613 = vmatpush1.msra.mxu0 %v42
    %614 = vmatprep.subr.mxu0 0.0
    %615 = vmatpush1.msra.mxu0 %v43
    %616 = vmatprep.subr.mxu0 0.0
    %617 = vmatpush1.msra.mxu0 %v44
    %618 = vmatprep.subr.mxu0 0.0
    %619 = vmatpush1.msra.mxu0 %v45
    %620 = vmatprep.subr.mxu0 0.0
    %621 = vmatpush1.msra.mxu0 %v46
    %622 = vmatprep.subr.mxu0 0.0
    %623 = vmatpush1.msra.mxu0 %v47
    %624 = vmatprep.subr.mxu0 0.0
    %625 = vmatpush1.msra.mxu0 %v48
    %626 = vmatprep.subr.mxu0 0.0
    %627 = vmatpush1.msra.mxu0 %v49
    %628 = vmatprep.subr.mxu0 0.0
    %629 = vmatpush1.msra.mxu0 0.0
    %630 = vmatprep.subr.mxu0 0.0
    %631 = vmatpush1.msra.mxu0 0.0
    %632 = vmatprep.subr.mxu0 0.0
    %633 = vmatpush1.msra.mxu0 0.0
    %634 = vmatprep.subr.mxu0 0.0
    %635 = vmatpush1.msra.mxu0 0.0
    %636 = vmatprep.subr.mxu0 0.0
    %637 = vmatpush1.msra.mxu0 0.0
    %638 = vmatprep.subr.mxu0 0.0
    %639 = vmatpush1.msra.mxu0 0.0
    %640 = vmatprep.subr.mxu0 0.0
    %641 = vmatpush1.msra.mxu0 0.0
    %642 = vmatprep.subr.mxu0 0.0
    %643 = vmatpush1.msra.mxu0 0.0
    %644 = vmatprep.subr.mxu0 0.0
    %645 = vmatpush1.msra.mxu0 0.0
    %646 = vmatprep.subr.mxu0 0.0
    %647 = vmatpush1.msra.mxu0 0.0
    %648 = vmatprep.subr.mxu0 0.0
    %649 = vmatpush1.msra.mxu0 0.0
    %650 = vmatprep.subr.mxu0 0.0
    %651 = vmatpush1.msra.mxu0 0.0
    %652 = vmatprep.subr.mxu0 0.0
    %653 = vmatpush1.msra.mxu0 0.0
    %654 = vmatprep.subr.mxu0 0.0
    %655 = vmatpush1.msra.mxu0 0.0
    %656 = vmatprep.subr.mxu0 0.0
    %657 = vmatpush1.msra.mxu0 0.0
    %658 = vmatprep.subr.mxu0 0.0
    %659 = vmatpush1.msra.mxu0 0.0
    %660 = vmatprep.subr.mxu0 0.0
    %661 = vmatpush1.msra.mxu0 0.0
    %662 = vmatprep.subr.mxu0 0.0
    %663 = vmatpush1.msra.mxu0 0.0
    %664 = vmatprep.subr.mxu0 0.0
    %665 = vmatpush1.msra.mxu0 0.0
    %666 = vmatprep.subr.mxu0 0.0
    %667 = vmatpush1.msra.mxu0 0.0
    %668 = vmatprep.subr.mxu0 0.0
    %669 = vmatpush1.msra.mxu0 0.0
    %670 = vmatprep.subr.mxu0 0.0
    %671 = vmatpush1.msra.mxu0 0.0
    %672 = vmatprep.subr.mxu0 0.0
    %673 = vmatpush1.msra.mxu0 0.0
    %674 = vmatprep.subr.mxu0 0.0
    %675 = vmatpush1.msra.mxu0 0.0
    %676 = vmatprep.mubr.f32.mxu0 0.0
    %677 = vmatmul.mubr.f32.gmra.mrb[0].mxu0 %v610
    %v678 = vpop.f32.mrb[0].mxu0
    %v679 = vadd.f32 0.0, %v678
    %v680 = vpop.f32.mrb[0].mxu0
    %681 = vdwg.mxu0
    %v683 = vrot.slane %v679, 4
    %v685 = vadd.f32 %v139, %v683
    %v686 = vtanh.pop %v685
    %v688 = vrot.slane %v686, 4
    %v689 = vsel %vm142, %v688, 0
    %691 = vmatprep.subr.mxu0 0.0
    %692 = vmatpush1.msra.mxu0 %v42
    %693 = vmatprep.subr.mxu0 0.0
    %694 = vmatpush1.msra.mxu0 %v43
    %695 = vmatprep.subr.mxu0 0.0
    %696 = vmatpush1.msra.mxu0 %v44
    %697 = vmatprep.subr.mxu0 0.0
    %698 = vmatpush1.msra.mxu0 %v45
    %699 = vmatprep.subr.mxu0 0.0
    %700 = vmatpush1.msra.mxu0 %v46
    %701 = vmatprep.subr.mxu0 0.0
    %702 = vmatpush1.msra.mxu0 %v47
    %703 = vmatprep.subr.mxu0 0.0
    %704 = vmatpush1.msra.mxu0 %v48
    %705 = vmatprep.subr.mxu0 0.0
    %706 = vmatpush1.msra.mxu0 %v49
    %707 = vmatprep.subr.mxu0 0.0
    %708 = vmatpush1.msra.mxu0 0.0
    %709 = vmatprep.subr.mxu0 0.0
    %710 = vmatpush1.msra.mxu0 0.0
    %711 = vmatprep.subr.mxu0 0.0
    %712 = vmatpush1.msra.mxu0 0.0
    %713 = vmatprep.subr.mxu0 0.0
    %714 = vmatpush1.msra.mxu0 0.0
    %715 = vmatprep.subr.mxu0 0.0
    %716 = vmatpush1.msra.mxu0 0.0
    %717 = vmatprep.subr.mxu0 0.0
    %718 = vmatpush1.msra.mxu0 0.0
    %719 = vmatprep.subr.mxu0 0.0
    %720 = vmatpush1.msra.mxu0 0.0
    %721 = vmatprep.subr.mxu0 0.0
    %722 = vmatpush1.msra.mxu0 0.0
    %723 = vmatprep.subr.mxu0 0.0
    %724 = vmatpush1.msra.mxu0 0.0
    %725 = vmatprep.subr.mxu0 0.0
    %726 = vmatpush1.msra.mxu0 0.0
    %727 = vmatprep.subr.mxu0 0.0
    %728 = vmatpush1.msra.mxu0 0.0
    %729 = vmatprep.subr.mxu0 0.0
    %730 = vmatpush1.msra.mxu0 0.0
    %731 = vmatprep.subr.mxu0 0.0
    %732 = vmatpush1.msra.mxu0 0.0
    %733 = vmatprep.subr.mxu0 0.0
    %734 = vmatpush1.msra.mxu0 0.0
    %735 = vmatprep.subr.mxu0 0.0
    %736 = vmatpush1.msra.mxu0 0.0
    %737 = vmatprep.subr.mxu0 0.0
    %738 = vmatpush1.msra.mxu0 0.0
    %739 = vmatprep.subr.mxu0 0.0
    %740 = vmatpush1.msra.mxu0 0.0
    %741 = vmatprep.subr.mxu0 0.0
    %742 = vmatpush1.msra.mxu0 0.0
    %743 = vmatprep.subr.mxu0 0.0
    %744 = vmatpush1.msra.mxu0 0.0
    %745 = vmatprep.subr.mxu0 0.0
    %746 = vmatpush1.msra.mxu0 0.0
    %747 = vmatprep.subr.mxu0 0.0
    %748 = vmatpush1.msra.mxu0 0.0
    %749 = vmatprep.subr.mxu0 0.0
    %750 = vmatpush1.msra.mxu0 0.0
    %751 = vmatprep.subr.mxu0 0.0
    %752 = vmatpush1.msra.mxu0 0.0
    %753 = vmatprep.subr.mxu0 0.0
    %754 = vmatpush1.msra.mxu0 0.0
    %755 = vmatprep.mubr.f32.mxu0 0.0
    %756 = vmatmul.mubr.f32.gmra.mrb[0].mxu0 %v689
    %v757 = vpop.f32.mrb[0].mxu0
    %v758 = vadd.f32 0.0, %v757
    %v759 = vpop.f32.mrb[0].mxu0
    %760 = vdwg.mxu0
    %v762 = vrot.slane %v758, 2
    %v764 = vadd.f32 %v139, %v762
    %v765 = vtanh.pop %v764
    %767 = vrot.lane.b32.xlu0 %v765, 96
    %v768 = vpop.permute.xlu0 %767
    %vm770 = vcmask 261126
    %v771 = vsel %vm770, %v768, 0.0
    %772 = vadd.xlane.f32.xlu0 %v771
    %v773 = vpop.xlane.xlu0 %772
    %v774 = vrcp.pop 32.0
    %v775 = vmul.f32 %v773, %v774
    %v776 = vsub.f32 %v765, %v775
    %v777 = vmul.f32 %v776, %v776
    %779 = vrot.lane.b32.xlu0 %v777, 96
    %v780 = vpop.permute.xlu0 %779
    %v782 = vsel %vm770, %v780, 0.0
    %783 = vadd.xlane.f32.xlu0 %v782
    %v784 = vpop.xlane.xlu0 %783
    %v785 = vmul.f32 %v784, %v774
    %v786 = vadd.f32 %v785, 1e-05
    %v787 = vrsqrt.pop %v786
    %v788 = vmul.f32 %v776, %v787
    %v789 = vld [vmem:[%s4] sm:$0x1]
    %v791 = vlaneseq
    %v792 = vshrl.u32 %v791, 7
    %v793 = vsub.s32 0, %v792
    %v794 = vrot.slane %v789, %v793
    %795 = vrot.lane.b32.xlu0 %v794, 32
    %v796 = vpop.permute.xlu0 %795
    %v798 = vmul.f32 %v788, %v796
    %v799 = vld [vmem:[%s5] sm:$0x1]
    %v801 = vlaneseq
    %v802 = vshrl.u32 %v801, 7
    %v803 = vsub.s32 0, %v802
    %v804 = vrot.slane %v799, %v803
    %805 = vrot.lane.b32.xlu0 %v804, 32
    %v806 = vpop.permute.xlu0 %805
    %v808 = vadd.f32 %v798, %v806
    %v809 = vld [vmem:[%s6] sm:$0xff]
    %v810 = vld [vmem:[%s6 + $0x8] sm:$0xff]
    %v811 = vld [vmem:[%s6 + $0x10] sm:$0xff]
    %v812 = vld [vmem:[%s6 + $0x18] sm:$0xff]
    %v813 = vld [vmem:[%s7] sm:$0x1]
    %v815 = vlaneseq
    %v816 = vshrl.u32 %v815, 7
    %v817 = vsub.s32 0, %v816
    %v818 = vrot.slane %v813, %v817
    %v821 = vrot.slane %v808, 6
    %822 = vrot.lane.b32.xlu0 %v821, 96
    %v823 = vpop.permute.xlu0 %822
    %vm824 = vcmask 261120
    %v825 = vsel %vm824, %v823, 0
    %827 = vmatprep.subr.mxu0 0.0
    %828 = vmatpush1.msra.mxu0 %v809
    %829 = vmatprep.subr.mxu0 0.0
    %830 = vmatpush1.msra.mxu0 %v810
    %831 = vmatprep.subr.mxu0 0.0
    %832 = vmatpush1.msra.mxu0 %v811
    %833 = vmatprep.subr.mxu0 0.0
    %834 = vmatpush1.msra.mxu0 %v812
    %835 = vmatprep.subr.mxu0 0.0
    %836 = vmatpush1.msra.mxu0 0.0
    %837 = vmatprep.subr.mxu0 0.0
    %838 = vmatpush1.msra.mxu0 0.0
    %839 = vmatprep.subr.mxu0 0.0
    %840 = vmatpush1.msra.mxu0 0.0
    %841 = vmatprep.subr.mxu0 0.0
    %842 = vmatpush1.msra.mxu0 0.0
    %843 = vmatprep.subr.mxu0 0.0
    %844 = vmatpush1.msra.mxu0 0.0
    %845 = vmatprep.subr.mxu0 0.0
    %846 = vmatpush1.msra.mxu0 0.0
    %847 = vmatprep.subr.mxu0 0.0
    %848 = vmatpush1.msra.mxu0 0.0
    %849 = vmatprep.subr.mxu0 0.0
    %850 = vmatpush1.msra.mxu0 0.0
    %851 = vmatprep.subr.mxu0 0.0
    %852 = vmatpush1.msra.mxu0 0.0
    %853 = vmatprep.subr.mxu0 0.0
    %854 = vmatpush1.msra.mxu0 0.0
    %855 = vmatprep.subr.mxu0 0.0
    %856 = vmatpush1.msra.mxu0 0.0
    %857 = vmatprep.subr.mxu0 0.0
    %858 = vmatpush1.msra.mxu0 0.0
    %859 = vmatprep.subr.mxu0 0.0
    %860 = vmatpush1.msra.mxu0 0.0
    %861 = vmatprep.subr.mxu0 0.0
    %862 = vmatpush1.msra.mxu0 0.0
    %863 = vmatprep.subr.mxu0 0.0
    %864 = vmatpush1.msra.mxu0 0.0
    %865 = vmatprep.subr.mxu0 0.0
    %866 = vmatpush1.msra.mxu0 0.0
    %867 = vmatprep.subr.mxu0 0.0
    %868 = vmatpush1.msra.mxu0 0.0
    %869 = vmatprep.subr.mxu0 0.0
    %870 = vmatpush1.msra.mxu0 0.0
    %871 = vmatprep.subr.mxu0 0.0
    %872 = vmatpush1.msra.mxu0 0.0
    %873 = vmatprep.subr.mxu0 0.0
    %874 = vmatpush1.msra.mxu0 0.0
    %875 = vmatprep.subr.mxu0 0.0
    %876 = vmatpush1.msra.mxu0 0.0
    %877 = vmatprep.subr.mxu0 0.0
    %878 = vmatpush1.msra.mxu0 0.0
    %879 = vmatprep.subr.mxu0 0.0
    %880 = vmatpush1.msra.mxu0 0.0
    %881 = vmatprep.subr.mxu0 0.0
    %882 = vmatpush1.msra.mxu0 0.0
    %883 = vmatprep.subr.mxu0 0.0
    %884 = vmatpush1.msra.mxu0 0.0
    %885 = vmatprep.subr.mxu0 0.0
    %886 = vmatpush1.msra.mxu0 0.0
    %887 = vmatprep.subr.mxu0 0.0
    %888 = vmatpush1.msra.mxu0 0.0
    %889 = vmatprep.subr.mxu0 0.0
    %890 = vmatpush1.msra.mxu0 0.0
    %891 = vmatprep.mubr.f32.mxu0 0.0
    %892 = vmatmul.mubr.f32.gmra.mrb[0].mxu0 %v825
    %v893 = vpop.f32.mrb[0].mxu0
    %v894 = vadd.f32 %v818, %v893
    %v895 = vpop.f32.mrb[0].mxu0
    %896 = vdwg.mxu0
    %vm897 = vcmask 91136
    %898 = vst.msk [vmem:[#allocation5] sm:$0x3] %vm897, %v894
    // Predicated region
    $region38: #{tpu_custom_call.1} parent=1 // pred_check
      _
    $region39: #{tpu_custom_call.1} parent=1 // pred_check_branch
      %900 = sbr.rel (0) target = $region41
    $region40: #{tpu_custom_call.1} parent=1 // pred_region
      %s902 = ssub.s32 32, 32
      %903 = vsyncadd [#allocation4], %s902
      %s905 = sshll.u32 [#allocation5], 4
      %s906 = int_to_ptr.vmem [resolvable:$true] %s905
      %908 = dma.vmem_to_hbm [thread:$0]  %s906, 32, %s8, [#allocation4]
    $region41: #{tpu_custom_call.1} parent=1 // pred_fallthru
      _
    // Predicated region
    $region42: #{tpu_custom_call.1} parent=1 // pred_check
      _
    $region43: #{tpu_custom_call.1} parent=1 // pred_check_branch
      %910 = sbr.rel (0) target = $region45
    $region44: #{tpu_custom_call.1} parent=1 // pred_region
      %911 = dma.done [#allocation4], 32
    $region45: #{tpu_custom_call.1} parent=1 // pred_fallthru
      _
    %912 = vsyncpa [#allocation3], 1
    %913 = vsyncpa [#allocation4], 1

</llo_original>
